<compile_context>
chip_gen: v7x
topology: tpu7x:2x2x1
jax: 0.10.0
libtpu: 0.0.40
codegen_flags: <defaults>
</compile_context>

<pallas_src>
import jax
import jax.numpy as jnp
from jax.experimental import pallas as pl
from jax.experimental.pallas import tpu as pltpu


# --------------------------------------------------------------------------- helpers
def _div_sixteen_mul(v):
    v = int(v)
    m = v % 16
    return (v // 16) * 16 + (16 if m > 0 else 0)


def _prepare(x):
    """Bilinear-resize spatial dims up to multiples of 16 (NCHW, native dtype).

    TODO(synk): fuse the bilinear resample into the kernel's 16-row band load to avoid
    the extra HBM round-trip when H or W is not already a multiple of 16.
    """
    B, C, H, W = x.shape
    hp, wp = _div_sixteen_mul(H), _div_sixteen_mul(W)
    if (H, W) != (hp, wp):
        # Round-up => upsampling only; half-pixel bilinear matches
        # F.interpolate(mode='bilinear', align_corners=False) for upsampling.
        x = jax.image.resize(x, (B, C, hp, wp), method="bilinear")
    return x


def _round_up(x, m):
    return -(-int(x) // int(m)) * int(m)


def _padded_block_bytes(B, tc, rows, cols, dtype):
    """VMEM footprint of a (B, tc, rows, cols) block, including lane/sublane padding."""
    dt = jnp.dtype(dtype)
    sublane = 8 * max(1, 4 // dt.itemsize)      # f32: 8, bf16: 16, int8/fp8: 32
    return int(B) * int(tc) * _round_up(rows, sublane) * _round_up(cols, 128) * dt.itemsize


def _vmem_capacity_bytes():
    """Physical per-core VMEM capacity; conservative fallback (v7x per-TC) if unknown."""
    try:
        info = pltpu.get_tpu_info()
        cap = getattr(info, "vmem_capacity_bytes", None)
        if cap:
            return int(cap)
    except Exception:
        pass
    return 64 << 20


def _pick_w_chunk(W, U, B, dtype, per_block_budget):
    """Column-chunk width (multiple of 16, divides W). Defaults to full W; splits only
    when W is 128-lane aligned and either (a) the parallel grid extent would be < 2
    (keep both v7x TensorCores busy) or (b) a single-channel band exceeds the budget."""
    if W % 128 != 0 or W < 256:
        return W
    need_parallel = U < 2
    need_vmem = _padded_block_bytes(B, 1, 16, W, dtype) > per_block_budget
    if not (need_parallel or need_vmem):
        return W
    n128 = W // 128
    for k in range(n128 // 2, 0, -1):
        wc = 128 * k
        if W % wc != 0:
            continue
        if _padded_block_bytes(B, 1, 16, wc, dtype) <= per_block_budget:
            return wc
    return 128


def _pick_channel_tile(C, per_channel_bytes, budget_bytes, override=None):
    """Largest divisor of C whose padded input block stays within the VMEM budget."""
    if override is not None:
        assert C % int(override) == 0, "channel_tile must divide C"
        return int(override)
    best = 1
    for d in range(1, C + 1):
        if C % d == 0 and d * per_channel_bytes <= budget_bytes:
            best = d
    return best


# --------------------------------------------------------------------------- kernels
def _band_attention_rows(s_band, t_band, seg):
    """Per-attention-row sum_n (s_hat - t_hat)^2 for one 16-row band.

    s_band/t_band: (B, 16, Wc) f32 channel-summed bands; seg: (Wc, Vc) one-hot mapping
    of each column to its 16-wide patch group. Returns (1, Vc) f32.
    """
    ss_hw = jnp.sum(s_band * s_band, axis=0)                           # (16, Wc)
    tt_hw = jnp.sum(t_band * t_band, axis=0)
    st_hw = jnp.sum(s_band * t_band, axis=0)
    # Fused segment-sum: one (48, Wc) x (Wc, Vc) MXU push instead of three.
    stacked = jnp.concatenate([ss_hw, tt_hw, st_hw], axis=0)           # (48, Wc)
    red = jnp.dot(stacked, seg, preferred_element_type=jnp.float32)    # (48, Vc)
    ss = jnp.sum(red[0:16], axis=0, keepdims=True)                     # (1, Vc) ||s_row||^2
    tt = jnp.sum(red[16:32], axis=0, keepdims=True)                    # (1, Vc) ||t_row||^2
    st = jnp.sum(red[32:48], axis=0, keepdims=True)                    # (1, Vc) <s_row,t_row>
    # F.normalize(x, dim=-1, eps=1e-12): x / max(||x||, eps) == x * rsqrt(max(||x||^2, eps^2))
    eps2 = jnp.float32(1e-24)
    rs = jax.lax.rsqrt(jnp.maximum(ss, eps2))
    rt = jax.lax.rsqrt(jnp.maximum(tt, eps2))
    return ss * rs * rs + tt * rt * rt - 2.0 * st * rs * rt            # (1, Vc)


def _at_loss_kernel_single(s_ref, t_ref, seg_ref, out_ref):
    """Grid = (U, Wc-chunks); all channels fit in one block -> no accumulators."""
    s_band = jnp.sum(s_ref[...].astype(jnp.float32), axis=1)           # (B, 16, Wc)
    t_band = jnp.sum(t_ref[...].astype(jnp.float32), axis=1)
    row_sq = _band_attention_rows(s_band, t_band, seg_ref[...])
    out_ref[...] = row_sq.reshape(1, 1, 1, -1)


def _at_loss_kernel_multi(s_ref, t_ref, seg_ref, out_ref, s_acc, t_acc):
    """Grid = (U, Wc-chunks, C-tiles); channel reduction on the innermost axis."""
    c = pl.program_id(2)
    s_band = jnp.sum(s_ref[...].astype(jnp.float32), axis=1)           # (B, 16, Wc)
    t_band = jnp.sum(t_ref[...].astype(jnp.float32), axis=1)

    @pl.when(c == 0)
    def _():                                                            # direct write, no zero-init
        s_acc[...] = s_band
        t_acc[...] = t_band

    @pl.when(c != 0)
    def _():
        s_acc[...] += s_band
        t_acc[...] += t_band

    @pl.when(c == pl.num_programs(2) - 1)
    def _():
        row_sq = _band_attention_rows(s_acc[...], t_acc[...], seg_ref[...])
        out_ref[...] = row_sq.reshape(1, 1, 1, -1)


# --------------------------------------------------------------------------- wrapper
def at_loss_patch(s_feature, t_feature, loss_weight=1.0, *, channel_tile=None):
    """Forward pass of ATLoss_patch. Inputs NCHW; returns scalar f32 loss."""
    assert s_feature.shape[1] == t_feature.shape[1]
    C = s_feature.shape[1]

    s = _prepare(s_feature)
    t = _prepare(t_feature)
    assert s.shape == t.shape, "student/teacher must match in (B, C, H16, W16)"
    B, _, H, W = s.shape
    U, V = H // 16, W // 16
    P, N = U * V, B * 16 * 16
    in_dt = s.dtype

    # ---- VMEM-aware tiling (padded footprints, generation-aware limits) ----
    vmem_cap = _vmem_capacity_bytes()
    # ~48 MiB on v7x (64 MiB/TC), ~96 MiB on v5e/v6e (128 MiB): headroom for internal scratch.
    vmem_target = min(100 << 20, (vmem_cap * 3) // 4)
    acc_est = _padded_block_bytes(B, 1, 16, W, jnp.float32)
    per_block_budget = min(16 << 20,
                           max(1 << 20, (vmem_target - 2 * acc_est - (2 << 20)) // 4))

    wc = _pick_w_chunk(W, U, B, in_dt, per_block_budget)
    n_wc, vc = W // wc, wc // 16
    per_channel = _padded_block_bytes(B, 1, 16, wc, in_dt)
    tc = _pick_channel_tile(C, per_channel, per_block_budget, override=channel_tile)
    c_tiles = C // tc

    blk_bytes = _padded_block_bytes(B, tc, 16, wc, in_dt)
    acc_bytes = _padded_block_bytes(B, 1, 16, wc, jnp.float32) if c_tiles > 1 else 0
    vmem_est = 2 * 2 * blk_bytes + 2 * acc_bytes + (2 << 20)   # double-buffered s/t + accs + slack
    vmem_limit = int(min(max(vmem_est, 32 << 20), vmem_target))
    if vmem_est > vmem_limit:  # pathological wide/large-B case: clamp near physical capacity
        vmem_limit = int(min(vmem_est, vmem_cap - (8 << 20)))

    # One-hot segment matrix (column -> 16-wide patch group), hoisted out of the kernel
    # epilogue and kept resident in VMEM via a constant index_map.
    seg = (jnp.arange(wc, dtype=jnp.int32)[:, None] // 16
           == jnp.arange(vc, dtype=jnp.int32)[None, :]).astype(jnp.float32)

    out_shape = jax.ShapeDtypeStruct((U, n_wc, 1, vc), jnp.float32)
    if c_tiles == 1:
        kernel = _at_loss_kernel_single
        grid = (U, n_wc)
        in_specs = [
            pl.BlockSpec((B, tc, 16, wc), lambda u, w: (0, 0, u, w)),
            pl.BlockSpec((B, tc, 16, wc), lambda u, w: (0, 0, u, w)),
            pl.BlockSpec((wc, vc), lambda u, w: (0, 0)),
        ]
        out_specs = pl.BlockSpec((1, 1, 1, vc), lambda u, w: (u, w, 0, 0))
        scratch = []
        semantics = ("parallel", "parallel")
    else:
        kernel = _at_loss_kernel_multi
        grid = (U, n_wc, c_tiles)
        in_specs = [
            pl.BlockSpec((B, tc, 16, wc), lambda u, w, c: (0, c, u, w)),
            pl.BlockSpec((B, tc, 16, wc), lambda u, w, c: (0, c, u, w)),
            pl.BlockSpec((wc, vc), lambda u, w, c: (0, 0)),
        ]
        out_specs = pl.BlockSpec((1, 1, 1, vc), lambda u, w, c: (u, w, 0, 0))
        scratch = [pltpu.VMEM((B, 16, wc), jnp.float32),
                   pltpu.VMEM((B, 16, wc), jnp.float32)]
        semantics = ("parallel", "parallel", "arbitrary")

    partials = pl.pallas_call(
        kernel,
        out_shape=out_shape,
        grid_spec=pltpu.PrefetchScalarGridSpec(
            num_scalar_prefetch=0,
            grid=grid,
            in_specs=in_specs,
            out_specs=out_specs,
            scratch_shapes=scratch,
        ),
        compiler_params=pltpu.CompilerParams(
            dimension_semantics=semantics,
            vmem_limit_bytes=vmem_limit,
        ),
    )(s, t, seg)

    # mean over the (P, N) attention matrix, then 1/C * loss_weight (scalar glue).
    loss_at = jnp.sum(partials) / jnp.float32(P * N)
    return (1.0 / C) * loss_weight * loss_at


# --------------------------------------------------------------------------- reference
def _reference(s_feature, t_feature, loss_weight=1.0):
    """Pure-JAX replica of the PyTorch forward (rearrange + F.normalize path)."""
    C = s_feature.shape[1]
    s = _prepare(s_feature).astype(jnp.float32)
    t = _prepare(t_feature).astype(jnp.float32)

    def patches(x):
        B, C_, H, W = x.shape
        x = jnp.transpose(x, (1, 0, 2, 3))                 # (C, B, H, W)
        u, v = H // 16, W // 16
        x = x.reshape(C_, B, u, 16, v, 16)
        x = jnp.transpose(x, (0, 2, 4, 1, 3, 5))           # (C, u, v, B, 16, 16)
        return x.reshape(C_, u * v, B * 16 * 16)

    def att(x):
        xs = x.sum(axis=0)
        n = jnp.sqrt(jnp.sum(xs * xs, axis=-1, keepdims=True))
        return xs / jnp.maximum(n, 1e-12)

    d = att(patches(s)) - att(patches(t))
    return (1.0 / C) * loss_weight * jnp.mean(d * d)


if __name__ == "__main__":
    key = jax.random.PRNGKey(0)
    k = jax.random.split(key, 8)

    # Case 1: f32, spatial already a multiple of 16 (no resize), c_tiles==1 fast path.
    s1 = jax.random.normal(k[0], (2, 4, 32, 32), dtype=jnp.float32)
    t1 = jax.random.normal(k[1], (2, 4, 32, 32), dtype=jnp.float32)
    out1 = jax.block_until_ready(at_loss_patch(s1, t1, loss_weight=1.0))
    ref1 = jax.block_until_ready(_reference(s1, t1, loss_weight=1.0))
    assert jnp.isfinite(out1), "loss is not finite"
    assert jnp.allclose(out1, ref1, rtol=2e-3, atol=1e-6), (out1, ref1)

    # Case 2: bf16 inputs (native-dtype streaming), spatial not a multiple of 16 (resize),
    # odd channel count.
    s2 = jax.random.normal(k[2], (2, 3, 24, 40), dtype=jnp.bfloat16)
    t2 = jax.random.normal(k[3], (2, 3, 24, 40), dtype=jnp.bfloat16)
    out2 = jax.block_until_ready(at_loss_patch(s2, t2, loss_weight=0.5))
    ref2 = jax.block_until_ready(_reference(s2, t2, loss_weight=0.5))
    assert jnp.isfinite(out2), "loss is not finite"
    assert jnp.allclose(out2, ref2, rtol=5e-3, atol=1e-6), (out2, ref2)

    # Case 3: forced channel tiling (channel_tile=2 => 4 reduction steps) to exercise the
    # accumulator path with the direct-write first tile.
    s3 = jax.random.normal(k[4], (2, 8, 32, 48), dtype=jnp.float32)
    t3 = jax.random.normal(k[5], (2, 8, 32, 48), dtype=jnp.float32)
    out3 = jax.block_until_ready(at_loss_patch(s3, t3, loss_weight=1.0, channel_tile=2))
    ref3 = jax.block_until_ready(_reference(s3, t3, loss_weight=1.0))
    assert jnp.isfinite(out3), "loss is not finite"
    assert jnp.allclose(out3, ref3, rtol=2e-3, atol=1e-6), (out3, ref3)

    # Case 4: U == 1 with 128-aligned W => W-chunk split (second parallel axis for v7x).
    s4 = jax.random.normal(k[6], (1, 2, 16, 256), dtype=jnp.float32)
    t4 = jax.random.normal(k[7], (1, 2, 16, 256), dtype=jnp.float32)
    out4 = jax.block_until_ready(at_loss_patch(s4, t4, loss_weight=1.0))
    ref4 = jax.block_until_ready(_reference(s4, t4, loss_weight=1.0))
    assert jnp.isfinite(out4), "loss is not finite"
    assert jnp.allclose(out4, ref4, rtol=2e-3, atol=1e-6), (out4, ref4)

    print("KERNEL_OK")
</pallas_src>

<mosaic_0001>
module attributes {stable_mosaic.version = 11 : i64} {
  func.func @_at_loss_kernel_single(%arg0: i32, %arg1: i32, %arg2: memref<2x4x16x32xf32, #tpu.memory_space<vmem>>, %arg3: memref<2x4x16x32xf32, #tpu.memory_space<vmem>>, %arg4: memref<32x2xf32, #tpu.memory_space<vmem>>, %arg5: memref<1x1x1x2xf32, #tpu.memory_space<vmem>>) attributes {dimension_semantics = [#tpu.dimension_semantics<parallel>, #tpu.dimension_semantics<parallel>], iteration_bounds = array<i64: 2, 1>, scalar_prefetch = 0 : i64, scratch_operands = 0 : i64, tpu.core_type = #tpu.core_type<tc>, window_params = [{transform_indices = @transform_0, window_bounds = array<i64: 2, 4, 16, 32>}, {transform_indices = @transform_1, window_bounds = array<i64: 2, 4, 16, 32>}, {pipeline_mode = #tpu.pipeline_mode<synchronous>, transform_indices = @transform_2, window_bounds = array<i64: 32, 2>}, {transform_indices = @transform_3, window_bounds = array<i64: 1, 1, 1, 2>}]} {
    %c0 = arith.constant 0 : index
    %c0_0 = arith.constant 0 : index
    %c0_1 = arith.constant 0 : index
    %c0_2 = arith.constant 0 : index
    %0 = vector.load %arg2[%c0, %c0_0, %c0_1, %c0_2] : memref<2x4x16x32xf32, #tpu.memory_space<vmem>>, vector<2x4x16x32xf32>
    %cst = arith.constant dense<0.000000e+00> : vector<2x16x32xf32>
    %1 = vector.multi_reduction <add>, %0, %cst [1] : vector<2x4x16x32xf32> to vector<2x16x32xf32>
    %c0_3 = arith.constant 0 : index
    %c0_4 = arith.constant 0 : index
    %c0_5 = arith.constant 0 : index
    %c0_6 = arith.constant 0 : index
    %2 = vector.load %arg3[%c0_3, %c0_4, %c0_5, %c0_6] : memref<2x4x16x32xf32, #tpu.memory_space<vmem>>, vector<2x4x16x32xf32>
    %cst_7 = arith.constant dense<0.000000e+00> : vector<2x16x32xf32>
    %3 = vector.multi_reduction <add>, %2, %cst_7 [1] : vector<2x4x16x32xf32> to vector<2x16x32xf32>
    %c0_8 = arith.constant 0 : index
    %c0_9 = arith.constant 0 : index
    %4 = vector.load %arg4[%c0_8, %c0_9] : memref<32x2xf32, #tpu.memory_space<vmem>>, vector<32x2xf32>
    %5 = arith.mulf %1, %1 : vector<2x16x32xf32>
    %cst_10 = arith.constant dense<0.000000e+00> : vector<16x32xf32>
    %6 = vector.multi_reduction <add>, %5, %cst_10 [0] : vector<2x16x32xf32> to vector<16x32xf32>
    %7 = arith.mulf %3, %3 : vector<2x16x32xf32>
    %cst_11 = arith.constant dense<0.000000e+00> : vector<16x32xf32>
    %8 = vector.multi_reduction <add>, %7, %cst_11 [0] : vector<2x16x32xf32> to vector<16x32xf32>
    %9 = arith.mulf %1, %3 : vector<2x16x32xf32>
    %cst_12 = arith.constant dense<0.000000e+00> : vector<16x32xf32>
    %10 = vector.multi_reduction <add>, %9, %cst_12 [0] : vector<2x16x32xf32> to vector<16x32xf32>
    %11 = tpu.concatenate %6, %8, %10 in 0 : vector<16x32xf32>, vector<16x32xf32>, vector<16x32xf32> -> vector<48x32xf32>
    %cst_13 = arith.constant dense<0.000000e+00> : vector<48x2xf32>
    %12 = tpu.matmul %11, %4, %cst_13 {dimension_numbers = #tpu.dot_dimension_numbers<[1], [0], [0], [1], [0, 0, 1, 1], [], []>} : vector<48x32xf32>, vector<32x2xf32>, vector<48x2xf32> -> vector<48x2xf32>
    %13 = vector.extract_strided_slice %12 {offsets = [0, 0], sizes = [16, 2], strides = [1, 1]} : vector<48x2xf32> to vector<16x2xf32>
    %cst_14 = arith.constant dense<0.000000e+00> : vector<2xf32>
    %14 = vector.multi_reduction <add>, %13, %cst_14 [0] : vector<16x2xf32> to vector<2xf32>
    %15 = vector.shape_cast %14 : vector<2xf32> to vector<1x2xf32>
    %16 = vector.extract_strided_slice %12 {offsets = [16, 0], sizes = [16, 2], strides = [1, 1]} : vector<48x2xf32> to vector<16x2xf32>
    %cst_15 = arith.constant dense<0.000000e+00> : vector<2xf32>
    %17 = vector.multi_reduction <add>, %16, %cst_15 [0] : vector<16x2xf32> to vector<2xf32>
    %18 = vector.shape_cast %17 : vector<2xf32> to vector<1x2xf32>
    %19 = vector.extract_strided_slice %12 {offsets = [32, 0], sizes = [16, 2], strides = [1, 1]} : vector<48x2xf32> to vector<16x2xf32>
    %cst_16 = arith.constant dense<0.000000e+00> : vector<2xf32>
    %20 = vector.multi_reduction <add>, %19, %cst_16 [0] : vector<16x2xf32> to vector<2xf32>
    %21 = vector.shape_cast %20 : vector<2xf32> to vector<1x2xf32>
    %cst_17 = arith.constant 1.000000e-24 : f32
    %22 = vector.broadcast %cst_17 : f32 to vector<1x2xf32>
    %23 = arith.maximumf %15, %22 : vector<1x2xf32>
    %24 = math.rsqrt %23 : vector<1x2xf32>
    %cst_18 = arith.constant 1.000000e-24 : f32
    %25 = vector.broadcast %cst_18 : f32 to vector<1x2xf32>
    %26 = arith.maximumf %18, %25 : vector<1x2xf32>
    %27 = math.rsqrt %26 : vector<1x2xf32>
    %28 = arith.mulf %15, %24 : vector<1x2xf32>
    %29 = arith.mulf %28, %24 : vector<1x2xf32>
    %30 = arith.mulf %18, %27 : vector<1x2xf32>
    %31 = arith.mulf %30, %27 : vector<1x2xf32>
    %32 = arith.addf %29, %31 : vector<1x2xf32>
    %cst_19 = arith.constant 2.000000e+00 : f32
    %33 = vector.broadcast %cst_19 : f32 to vector<1x2xf32>
    %34 = arith.mulf %33, %21 : vector<1x2xf32>
    %35 = arith.mulf %34, %24 : vector<1x2xf32>
    %36 = arith.mulf %35, %27 : vector<1x2xf32>
    %37 = arith.subf %32, %36 : vector<1x2xf32>
    %38 = vector.shape_cast %37 : vector<1x2xf32> to vector<1x1x1x2xf32>
    %c0_20 = arith.constant 0 : index
    %c0_21 = arith.constant 0 : index
    %c0_22 = arith.constant 0 : index
    %c0_23 = arith.constant 0 : index
    %39 = vector.load %arg5[%c0_20, %c0_21, %c0_22, %c0_23] : memref<1x1x1x2xf32, #tpu.memory_space<vmem>>, vector<1x1x1x2xf32>
    tpu.vector_store %arg5[%c0_20, %c0_21, %c0_22, %c0_23], %38 {strides = array<i32>} : memref<1x1x1x2xf32, #tpu.memory_space<vmem>>, vector<1x1x1x2xf32>,
    return
  }
  func.func @transform_0(%arg0: i32, %arg1: i32) -> (i32, i32, i32, i32) {
    %c0_i32 = arith.constant 0 : i32
    %c0_i32_0 = arith.constant 0 : i32
    %c0_i32_1 = arith.constant 0 : i32
    return %c0_i32, %c0_i32_0, %arg0, %arg1 : i32, i32, i32, i32
  }
  func.func @transform_1(%arg0: i32, %arg1: i32) -> (i32, i32, i32, i32) {
    %c0_i32 = arith.constant 0 : i32
    %c0_i32_0 = arith.constant 0 : i32
    %c0_i32_1 = arith.constant 0 : i32
    return %c0_i32, %c0_i32_0, %arg0, %arg1 : i32, i32, i32, i32
  }
  func.func @transform_2(%arg0: i32, %arg1: i32) -> (i32, i32) {
    %c0_i32 = arith.constant 0 : i32
    %c0_i32_0 = arith.constant 0 : i32
    %c0_i32_1 = arith.constant 0 : i32
    return %c0_i32, %c0_i32_0 : i32, i32
  }
  func.func @transform_3(%arg0: i32, %arg1: i32) -> (i32, i32, i32, i32) {
    %c0_i32 = arith.constant 0 : i32
    %c0_i32_0 = arith.constant 0 : i32
    %c0_i32_1 = arith.constant 0 : i32
    return %arg0, %arg1, %c0_i32, %c0_i32_0 : i32, i32, i32, i32
  }
}

</mosaic_0001>

<llo_original>
// kernel: tpu_custom_call.1
$region0: #{tpu_custom_call.1}
  #allocation0 [shape = 'u32[]', space=smem, size = 0x4, offset = 0x4, fixed_abs, tag = 'smem constant byte address 0x4 - core index']
  #allocation1 [shape = 'u32[144,128]{1,0:T(1,128)}', space=vmem, size = 0x12000, scoped, tag = 'internal scratch']
  #allocation8 [shape = 's32[]', space=sflag, size = 0x4, offset = 0, fixed_abs, tag = 'sflag constant byte address 0x0 - dummy sync flag']
  #allocation10 [shape = 's32[]', space=sflag, size = 0x4, offset = 0, fixed_abs, tag = 'sflag constant byte address 0x0 - dummy sync flag']
  %s0 = inlined_call_operand.hbm [shape: f32[2,4,32,32], index: 0, kind: input, shape index: {}]
  %s1 = inlined_call_operand.hbm [shape: f32[2,4,32,32], index: 1, kind: input, shape index: {}]
  %s2 = inlined_call_operand.vmem [shape: f32[32,2], index: 2, kind: input, shape index: {}]
  %s3 = inlined_call_operand.hbm [shape: f32[2,1,1,2], index: 3, kind: output, shape index: {}]
  %s4 = sld [smem:[#allocation0]]
  $region53: #{tpu_custom_call.1} parent=0
    _
  %s6 = ssub.s32 1, %s4
  %s7 = scalar_select 0, %s6, %s4
  $region1: #{tpu_custom_call.1} parent=0
    #allocation2 [shape = 'u8[131072]{0}', space=vmem, size = 0x20000, scoped, tag = 'input window, operand 0']
    #allocation3 [shape = 's32[2]{0}', space=sflag, size = 0x8, scoped, tag = 'scoped memory for tpu_custom_call.1']
    #allocation4 [shape = 's32[2]{0}', space=sflag, size = 0x8, scoped, tag = 'scoped memory for tpu_custom_call.1']
    #allocation5 [shape = 'u8[131072]{0}', space=vmem, size = 0x20000, scoped, tag = 'input window, operand 1']
    #allocation6 [shape = 's32[2]{0}', space=sflag, size = 0x8, scoped, tag = 'scoped memory for tpu_custom_call.1']
    #allocation7 [shape = 'u8[1024]{0}', space=vmem, size = 0x400, scoped, tag = 'output window, operand 0']
    %8 = vsyncpa [#allocation3], 0
    %s9 = scalar_lea.sflag [#allocation3], 1
    %10 = vsyncpa %s9, 0
    %11 = vsyncpa [#allocation6], 0
    %s12 = scalar_lea.sflag [#allocation6], 1
    %13 = vsyncpa %s12, 0
    %14 = vsyncpa [#allocation4], 0
    %s15 = scalar_lea.sflag [#allocation4], 1
    %16 = vsyncpa %s15, 0
    loop: start=0, step=1, limit=4
    $region2: #{tpu_custom_call.1} parent=1 // loop_pre_header
      _
    $region3: #{tpu_custom_call.1} parent=1 // loop_header
      %s18 = sphi 0, %s22
      %p19 = scmp.ge.s32.totalorder %s18, 4
      %s25 = sphi 0, %s37
      %s26 = sphi 0, %s33
      %s27 = sphi 0, %s25
      %s28 = sphi 0, %s26
      %s29 = sphi 0, %s27
      %s30 = sphi 0, %s28
      %s42 = sphi 0, %s44
      %s45 = sphi 0, %s42
      %s46 = sphi 0, %s45
      %s62 = sphi 0, %s46
      %s70 = sphi 0, %s72
      %s73 = sphi 0, %s70
      %s74 = sphi 0, %s73
      %s90 = sphi 0, %s74
      %s94 = sphi 0, %s94
      %s96 = sphi 0, %s94
      %s97 = sphi 0, %s96
      %s111 = sphi 0, %s97
      %s119 = sphi 0, %s121
      %s122 = sphi 0, %s119
      %s123 = sphi 0, %s122
      %s139 = sphi 0, %s123
    $region4: #{tpu_custom_call.1} parent=1 // loop_header_branch
      %21 = sbr.rel (%p19) target = $region8
    $region5: #{tpu_custom_call.1} parent=1 // loop_body
      %s23 = ssub.s32 %s18, 1
      %s24 = ssub.s32 %s18, 2
      %s31 = sadd.s32 1, %s26
      %p32 = scmp.ge.s32.totalorder %s31, 1
      %s33 = scalar_select %p32, 0, %s31
      %s34 = sadd.s32 1, %s25
      %s35 = scalar_select %p32, %s34, %s25
      %p36 = scmp.ge.s32.totalorder %s35, 2
      %s37 = scalar_select %p36, 0, %s35
      %s38 = ssub.s32 %s25, %s37
      %s39 = ssub.s32 %s26, %s33
      %s40 = sor.u32 %s38, %s39
      %p41 = scmp.eq.s32.totalorder %s40, 0
      %s43 = sadd.s32 %s42, 1
      %s44 = scalar_select %p41, %s42, %s43
      %p47 = pneg %p41
      %p48 = scmp.eq.s32.totalorder %s18, 1
      %p49 = por %p47, %p48
      %p50 = scmp.ne.s32.totalorder %s42, %s45
      %p51 = scmp.eq.s32.totalorder %s18, 0
      %p52 = por %p50, %p51
      %p53 = scmp.ne.s32.totalorder %s42, %s45
      %p54 = scmp.eq.s32.totalorder %s23, 1
      %p55 = por %p53, %p54
      %p56 = scmp.ne.s32.totalorder %s45, %s46
      %p57 = scmp.eq.s32.totalorder %s23, 0
      %p58 = por %p56, %p57
      %p59 = scmp.ne.s32.totalorder %s45, %s46
      %p60 = scmp.eq.s32.totalorder %s24, 1
      %p61 = por %p59, %p60
      %p63 = scmp.ne.s32.totalorder %s46, %s62
      %p64 = scmp.eq.s32.totalorder %s24, 0
      %p65 = por %p63, %p64
      %s66 = ssub.s32 %s25, %s37
      %s67 = ssub.s32 %s26, %s33
      %s68 = sor.u32 %s66, %s67
      %p69 = scmp.eq.s32.totalorder %s68, 0
      %s71 = sadd.s32 %s70, 1
      %s72 = scalar_select %p69, %s70, %s71
      %p75 = pneg %p69
      %p76 = scmp.eq.s32.totalorder %s18, 1
      %p77 = por %p75, %p76
      %p78 = scmp.ne.s32.totalorder %s70, %s73
      %p79 = scmp.eq.s32.totalorder %s18, 0
      %p80 = por %p78, %p79
      %p81 = scmp.ne.s32.totalorder %s70, %s73
      %p82 = scmp.eq.s32.totalorder %s23, 1
      %p83 = por %p81, %p82
      %p84 = scmp.ne.s32.totalorder %s73, %s74
      %p85 = scmp.eq.s32.totalorder %s23, 0
      %p86 = por %p84, %p85
      %p87 = scmp.ne.s32.totalorder %s73, %s74
      %p88 = scmp.eq.s32.totalorder %s24, 1
      %p89 = por %p87, %p88
      %p91 = scmp.ne.s32.totalorder %s74, %s90
      %p92 = scmp.eq.s32.totalorder %s24, 0
      %p93 = por %p91, %p92
      %s95 = sadd.s32 %s94, 1
      %p98 = scmp.eq.s32.totalorder %s18, 1
      %p99 = scmp.ne.s32.totalorder %s94, %s96
      %p100 = scmp.eq.s32.totalorder %s18, 0
      %p101 = por %p99, %p100
      %p102 = scmp.ne.s32.totalorder %s94, %s96
      %p103 = scmp.eq.s32.totalorder %s23, 1
      %p104 = por %p102, %p103
      %p105 = scmp.ne.s32.totalorder %s96, %s97
      %p106 = scmp.eq.s32.totalorder %s23, 0
      %p107 = por %p105, %p106
      %p108 = scmp.ne.s32.totalorder %s96, %s97
      %p109 = scmp.eq.s32.totalorder %s24, 1
      %p110 = por %p108, %p109
      %p112 = scmp.ne.s32.totalorder %s97, %s111
      %p113 = scmp.eq.s32.totalorder %s24, 0
      %p114 = por %p112, %p113
      %s115 = ssub.s32 %s25, %s37
      %s116 = ssub.s32 %s26, %s33
      %s117 = sor.u32 %s115, %s116
      %p118 = scmp.eq.s32.totalorder %s117, 0
      %s120 = sadd.s32 %s119, 1
      %s121 = scalar_select %p118, %s119, %s120
      %p124 = pneg %p118
      %p125 = scmp.eq.s32.totalorder %s18, 1
      %p126 = por %p124, %p125
      %p127 = scmp.ne.s32.totalorder %s119, %s122
      %p128 = scmp.eq.s32.totalorder %s18, 0
      %p129 = por %p127, %p128
      %p130 = scmp.ne.s32.totalorder %s119, %s122
      %p131 = scmp.eq.s32.totalorder %s23, 1
      %p132 = por %p130, %p131
      %p133 = scmp.ne.s32.totalorder %s122, %s123
      %p134 = scmp.eq.s32.totalorder %s23, 0
      %p135 = por %p133, %p134
      %p136 = scmp.ne.s32.totalorder %s122, %s123
      %p137 = scmp.eq.s32.totalorder %s24, 1
      %p138 = por %p136, %p137
      %p140 = scmp.ne.s32.totalorder %s123, %s139
      %p141 = scmp.eq.s32.totalorder %s24, 0
      %p142 = por %p140, %p141
      %p143 = scmp.le.s32.totalorder 1, %s18
      %p144 = scmp.lt.s32.totalorder %s18, 3
      %p145 = pnand %p143, %p144
      %p146 = pneg %p145
      // Predicated region
      $region9: #{tpu_custom_call.1} parent=5 // pred_check
        _
      $region10: #{tpu_custom_call.1} parent=5 // pred_check_branch
        %148 = sbr.rel (%p145) target = $region12
      $region11: #{tpu_custom_call.1} parent=5 // pred_region
        %s149 = ssub.s32 %s18, 1
        // Predicated region
        $region13: #{tpu_custom_call.1} parent=11 // pred_check
          %p150 = pneg %p107
        $region14: #{tpu_custom_call.1} parent=11 // pred_check_branch
          %152 = sbr.rel (%p150) target = $region16
        $region15: #{tpu_custom_call.1} parent=11 // pred_region
          _
        $region16: #{tpu_custom_call.1} parent=11 // pred_fallthru
          _
      $region12: #{tpu_custom_call.1} parent=5 // pred_fallthru
        _
      %p153 = scmp.lt.s32.totalorder %s18, 2
      // Predicated region
      $region17: #{tpu_custom_call.1} parent=5 // pred_check
        %p154 = pneg %p153
      $region18: #{tpu_custom_call.1} parent=5 // pred_check_branch
        %156 = sbr.rel (%p154) target = $region20
      $region19: #{tpu_custom_call.1} parent=5 // pred_region
        // Predicated region
        $region21: #{tpu_custom_call.1} parent=19 // pred_check
          %p157 = pneg %p52
        $region22: #{tpu_custom_call.1} parent=19 // pred_check_branch
          %159 = sbr.rel (%p157) target = $region24
        $region23: #{tpu_custom_call.1} parent=19 // pred_region
          #allocation9 [shape = 'u32[6]{0}', space=smem, size = 0x18, scoped, tag = 'DMA stride descriptor']
          %s160 = sand.u32 %s42, 1
          %s161 = scalar_lea.sflag [#allocation3], %s160
          %s162 = sand.u32 %s42, 1
          %s163 = smul.addr %s162, 128
          %s164 = scalar_lea.vmem [#allocation2], %s163
          %s165 = smul.u32 2, %s25
          %s167 = ssub.s32 2048, 2048
          %168 = vsyncadd %s161, %s167
          %s169 = sadd.s32 %s26, %s165
          %s170 = smul.addr %s169, 128
          %s171 = scalar_lea.hbm %s0, %s170
          %s173 = sshll.u32 1, 14
          %s174 = sxor.u32 4294967295, %s173
          %s176 = sld [smem:[#allocation0]]
          %s177 = sadd.s32 2, %s176
          %s179 = sshll.u32 7, 26
          %s180 = sxor.u32 4294967295, %s179
          %s181 = sand.u32 0, %s180
          %s182 = sshll.u32 %s177, 26
          %s183 = sor.u32 %s181, %s182
          %s184 = sshll.u32 %s164, 4
          %s185 = int_to_ptr.vmem [resolvable:$true] %s184
          %191 = sst [smem:[#allocation9]] 512
          %s192 = scalar_lea.smem [#allocation9], 1
          %193 = sst [smem:[%s192]] 256
          %s194 = scalar_lea.smem [#allocation9], 2
          %195 = sst [smem:[%s194]] 2
          %s196 = scalar_lea.smem [#allocation9], 3
          %197 = sst [smem:[%s196]] 128
          %s198 = scalar_lea.smem [#allocation9], 4
          %199 = sst [smem:[%s198]] 128
          %s200 = scalar_lea.smem [#allocation9], 5
          %201 = sst [smem:[%s200]] 8
          %203 = dma.general %s171, 2048, %s185, %s161, [#allocation8], [#allocation9], %s183, 0
        $region24: #{tpu_custom_call.1} parent=19 // pred_fallthru
          _
        // Predicated region
        $region25: #{tpu_custom_call.1} parent=19 // pred_check
          %p204 = pneg %p80
        $region26: #{tpu_custom_call.1} parent=19 // pred_check_branch
          %206 = sbr.rel (%p204) target = $region28
        $region27: #{tpu_custom_call.1} parent=19 // pred_region
          #allocation11 [shape = 'u32[6]{0}', space=smem, size = 0x18, scoped, tag = 'DMA stride descriptor']
          %s207 = sand.u32 %s70, 1
          %s208 = scalar_lea.sflag [#allocation6], %s207
          %s209 = sand.u32 %s70, 1
          %s210 = smul.addr %s209, 128
          %s211 = scalar_lea.vmem [#allocation5], %s210
          %s212 = smul.u32 2, %s25
          %s214 = ssub.s32 2048, 2048
          %215 = vsyncadd %s208, %s214
          %s216 = sadd.s32 %s26, %s212
          %s217 = smul.addr %s216, 128
          %s218 = scalar_lea.hbm %s1, %s217
          %s220 = sshll.u32 1, 14
          %s221 = sxor.u32 4294967295, %s220
          %s223 = sld [smem:[#allocation0]]
          %s224 = sadd.s32 2, %s223
          %s226 = sshll.u32 7, 26
          %s227 = sxor.u32 4294967295, %s226
          %s228 = sand.u32 0, %s227
          %s229 = sshll.u32 %s224, 26
          %s230 = sor.u32 %s228, %s229
          %s231 = sshll.u32 %s211, 4
          %s232 = int_to_ptr.vmem [resolvable:$true] %s231
          %238 = sst [smem:[#allocation11]] 512
          %s239 = scalar_lea.smem [#allocation11], 1
          %240 = sst [smem:[%s239]] 256
          %s241 = scalar_lea.smem [#allocation11], 2
          %242 = sst [smem:[%s241]] 2
          %s243 = scalar_lea.smem [#allocation11], 3
          %244 = sst [smem:[%s243]] 128
          %s245 = scalar_lea.smem [#allocation11], 4
          %246 = sst [smem:[%s245]] 128
          %s247 = scalar_lea.smem [#allocation11], 5
          %248 = sst [smem:[%s247]] 8
          %250 = dma.general %s218, 2048, %s232, %s208, [#allocation10], [#allocation11], %s230, 0
        $region28: #{tpu_custom_call.1} parent=19 // pred_fallthru
          _
      $region20: #{tpu_custom_call.1} parent=5 // pred_fallthru
        _
      %p251 = scmp.le.s32.totalorder 1, %s18
      %p252 = scmp.lt.s32.totalorder %s18, 3
      %p253 = pnand %p251, %p252
      %p254 = pneg %p253
      // Predicated region
      $region29: #{tpu_custom_call.1} parent=5 // pred_check
        _
      $region30: #{tpu_custom_call.1} parent=5 // pred_check_branch
        %256 = sbr.rel (%p253) target = $region32
      $region31: #{tpu_custom_call.1} parent=5 // pred_region
        %s257 = ssub.s32 %s18, 1
        %s258 = sand.u32 %s45, 1
        %s259 = scalar_lea.sflag [#allocation3], %s258
        %s260 = sand.u32 %s45, 1
        %s261 = smul.addr %s260, 128
        %s262 = scalar_lea.vmem [#allocation2], %s261
        // Predicated region
        $region33: #{tpu_custom_call.1} parent=31 // pred_check
          %p263 = pneg %p58
        $region34: #{tpu_custom_call.1} parent=31 // pred_check_branch
          %265 = sbr.rel (%p263) target = $region36
        $region35: #{tpu_custom_call.1} parent=31 // pred_region
          %266 = dma.done %s259, 2048
        $region36: #{tpu_custom_call.1} parent=31 // pred_fallthru
          _
        %s267 = sand.u32 %s73, 1
        %s268 = scalar_lea.sflag [#allocation6], %s267
        %s269 = sand.u32 %s73, 1
        %s270 = smul.addr %s269, 128
        %s271 = scalar_lea.vmem [#allocation5], %s270
        // Predicated region
        $region37: #{tpu_custom_call.1} parent=31 // pred_check
          %p272 = pneg %p86
        $region38: #{tpu_custom_call.1} parent=31 // pred_check_branch
          %274 = sbr.rel (%p272) target = $region40
        $region39: #{tpu_custom_call.1} parent=31 // pred_region
          %275 = dma.done %s268, 2048
        $region40: #{tpu_custom_call.1} parent=31 // pred_fallthru
          _
        %s276 = sand.u32 %s45, 1
        %s277 = scalar_lea.sflag [#allocation3], %s276
        %s278 = sand.u32 %s45, 1
        %s279 = smul.addr %s278, 128
        %s280 = scalar_lea.vmem [#allocation2], %s279
        %p281 = pneg %p58
        %p282 = pneg %p55
        %s283 = sand.u32 %s73, 1
        %s284 = scalar_lea.sflag [#allocation6], %s283
        %s285 = sand.u32 %s73, 1
        %s286 = smul.addr %s285, 128
        %s287 = scalar_lea.vmem [#allocation5], %s286
        %p288 = pneg %p86
        %p289 = pneg %p83
        %p290 = pneg %p107
        %p291 = pneg %p104
        %p292 = pneg %p135
        %p293 = pneg %p132
        %s294 = sand.u32 %s122, 1
        %s295 = scalar_lea.sflag [#allocation4], %s294
        %s296 = sand.u32 %s122, 1
        %s297 = scalar_lea.vmem [#allocation7], %s296
        %s298 = smul.u32 2, %s27
        %s299 = smul.u32 2, %s27
        %v300 = vld [vmem:[%s262] sm:$0xff]
        %v301 = vld [vmem:[%s262 + $0x8] sm:$0xff]
        %v302 = vld [vmem:[%s262 + $0x10] sm:$0xff]
        %v303 = vld [vmem:[%s262 + $0x18] sm:$0xff]
        %v304 = vld [vmem:[%s262 + $0x20] sm:$0xff]
        %v305 = vld [vmem:[%s262 + $0x28] sm:$0xff]
        %v306 = vld [vmem:[%s262 + $0x30] sm:$0xff]
        %v307 = vld [vmem:[%s262 + $0x38] sm:$0xff]
        %v308 = vld [vmem:[%s262 + $0x40] sm:$0xff]
        %v309 = vld [vmem:[%s262 + $0x48] sm:$0xff]
        %v310 = vld [vmem:[%s262 + $0x50] sm:$0xff]
        %v311 = vld [vmem:[%s262 + $0x58] sm:$0xff]
        %v312 = vld [vmem:[%s262 + $0x60] sm:$0xff]
        %v313 = vld [vmem:[%s262 + $0x68] sm:$0xff]
        %v314 = vld [vmem:[%s262 + $0x70] sm:$0xff]
        %v315 = vld [vmem:[%s262 + $0x78] sm:$0xff]
        %vm316 = vcmask 261120
        %v317 = vsel %vm316, %v300, 0.0
        %v318 = vsel %vm316, %v302, 0.0
        %v319 = vadd.f32 %v317, %v318
        %v320 = vsel %vm316, %v304, 0.0
        %v321 = vadd.f32 %v319, %v320
        %v322 = vsel %vm316, %v306, 0.0
        %v323 = vadd.f32 %v321, %v322
        %v324 = vsel %vm316, %v301, 0.0
        %v325 = vsel %vm316, %v303, 0.0
        %v326 = vadd.f32 %v324, %v325
        %v327 = vsel %vm316, %v305, 0.0
        %v328 = vadd.f32 %v326, %v327
        %v329 = vsel %vm316, %v307, 0.0
        %v330 = vadd.f32 %v328, %v329
        %v331 = vsel %vm316, %v308, 0.0
        %v332 = vsel %vm316, %v310, 0.0
        %v333 = vadd.f32 %v331, %v332
        %v334 = vsel %vm316, %v312, 0.0
        %v335 = vadd.f32 %v333, %v334
        %v336 = vsel %vm316, %v314, 0.0
        %v337 = vadd.f32 %v335, %v336
        %v338 = vsel %vm316, %v309, 0.0
        %v339 = vsel %vm316, %v311, 0.0
        %v340 = vadd.f32 %v338, %v339
        %v341 = vsel %vm316, %v313, 0.0
        %v342 = vadd.f32 %v340, %v341
        %v343 = vsel %vm316, %v315, 0.0
        %v344 = vadd.f32 %v342, %v343
        %v345 = vld [vmem:[%s271] sm:$0xff]
        %v346 = vld [vmem:[%s271 + $0x8] sm:$0xff]
        %v347 = vld [vmem:[%s271 + $0x10] sm:$0xff]
        %v348 = vld [vmem:[%s271 + $0x18] sm:$0xff]
        %v349 = vld [vmem:[%s271 + $0x20] sm:$0xff]
        %v350 = vld [vmem:[%s271 + $0x28] sm:$0xff]
        %v351 = vld [vmem:[%s271 + $0x30] sm:$0xff]
        %v352 = vld [vmem:[%s271 + $0x38] sm:$0xff]
        %v353 = vld [vmem:[%s271 + $0x40] sm:$0xff]
        %v354 = vld [vmem:[%s271 + $0x48] sm:$0xff]
        %v355 = vld [vmem:[%s271 + $0x50] sm:$0xff]
        %v356 = vld [vmem:[%s271 + $0x58] sm:$0xff]
        %v357 = vld [vmem:[%s271 + $0x60] sm:$0xff]
        %v358 = vld [vmem:[%s271 + $0x68] sm:$0xff]
        %v359 = vld [vmem:[%s271 + $0x70] sm:$0xff]
        %v360 = vld [vmem:[%s271 + $0x78] sm:$0xff]
        %v361 = vsel %vm316, %v345, 0.0
        %v362 = vsel %vm316, %v347, 0.0
        %v363 = vadd.f32 %v361, %v362
        %v364 = vsel %vm316, %v349, 0.0
        %v365 = vadd.f32 %v363, %v364
        %v366 = vsel %vm316, %v351, 0.0
        %v367 = vadd.f32 %v365, %v366
        %v368 = vsel %vm316, %v346, 0.0
        %v369 = vsel %vm316, %v348, 0.0
        %v370 = vadd.f32 %v368, %v369
        %v371 = vsel %vm316, %v350, 0.0
        %v372 = vadd.f32 %v370, %v371
        %v373 = vsel %vm316, %v352, 0.0
        %v374 = vadd.f32 %v372, %v373
        %v375 = vsel %vm316, %v353, 0.0
        %v376 = vsel %vm316, %v355, 0.0
        %v377 = vadd.f32 %v375, %v376
        %v378 = vsel %vm316, %v357, 0.0
        %v379 = vadd.f32 %v377, %v378
        %v380 = vsel %vm316, %v359, 0.0
        %v381 = vadd.f32 %v379, %v380
        %v382 = vsel %vm316, %v354, 0.0
        %v383 = vsel %vm316, %v356, 0.0
        %v384 = vadd.f32 %v382, %v383
        %v385 = vsel %vm316, %v358, 0.0
        %v386 = vadd.f32 %v384, %v385
        %v387 = vsel %vm316, %v360, 0.0
        %v388 = vadd.f32 %v386, %v387
        %v389 = vld [vmem:[%s2] sm:$0xff]
        %v390 = vld [vmem:[%s2 + $0x8] sm:$0xff]
        %v391 = vld [vmem:[%s2 + $0x10] sm:$0xff]
        %v392 = vld [vmem:[%s2 + $0x18] sm:$0xff]
        %v393 = vmul.f32 %v323, %v323
        %v394 = vmul.f32 %v330, %v330
        %v395 = vmul.f32 %v337, %v337
        %v396 = vmul.f32 %v344, %v344
        %v397 = vsel %vm316, %v393, 0.0
        %v398 = vsel %vm316, %v395, 0.0
        %v399 = vadd.f32 %v397, %v398
        %v400 = vsel %vm316, %v394, 0.0
        %v401 = vsel %vm316, %v396, 0.0
        %v402 = vadd.f32 %v400, %v401
        %v403 = vmul.f32 %v367, %v367
        %v404 = vmul.f32 %v374, %v374
        %v405 = vmul.f32 %v381, %v381
        %v406 = vmul.f32 %v388, %v388
        %v407 = vsel %vm316, %v403, 0.0
        %v408 = vsel %vm316, %v405, 0.0
        %v409 = vadd.f32 %v407, %v408
        %v410 = vsel %vm316, %v404, 0.0
        %v411 = vsel %vm316, %v406, 0.0
        %v412 = vadd.f32 %v410, %v411
        %v413 = vmul.f32 %v323, %v367
        %v414 = vmul.f32 %v330, %v374
        %v415 = vmul.f32 %v337, %v381
        %v416 = vmul.f32 %v344, %v388
        %v417 = vsel %vm316, %v413, 0.0
        %v418 = vsel %vm316, %v415, 0.0
        %v419 = vadd.f32 %v417, %v418
        %v420 = vsel %vm316, %v414, 0.0
        %v421 = vsel %vm316, %v416, 0.0
        %v422 = vadd.f32 %v420, %v421
        %v424 = vsel %vm316, %v399, 0
        %v427 = vsel %vm316, %v402, 0
        %v430 = vsel %vm316, %v409, 0
        %v433 = vsel %vm316, %v412, 0
        %v436 = vsel %vm316, %v419, 0
        %v439 = vsel %vm316, %v422, 0
        %441 = vmatprep.subr.mxu0 0.0
        %442 = vmatpush1.msra.mxu0 %v389
        %443 = vmatprep.subr.mxu0 0.0
        %444 = vmatpush1.msra.mxu0 %v390
        %445 = vmatprep.subr.mxu0 0.0
        %446 = vmatpush1.msra.mxu0 %v391
        %447 = vmatprep.subr.mxu0 0.0
        %448 = vmatpush1.msra.mxu0 %v392
        %449 = vmatprep.subr.mxu0 0.0
        %450 = vmatpush1.msra.mxu0 0.0
        %451 = vmatprep.subr.mxu0 0.0
        %452 = vmatpush1.msra.mxu0 0.0
        %453 = vmatprep.subr.mxu0 0.0
        %454 = vmatpush1.msra.mxu0 0.0
        %455 = vmatprep.subr.mxu0 0.0
        %456 = vmatpush1.msra.mxu0 0.0
        %457 = vmatprep.subr.mxu0 0.0
        %458 = vmatpush1.msra.mxu0 0.0
        %459 = vmatprep.subr.mxu0 0.0
        %460 = vmatpush1.msra.mxu0 0.0
        %461 = vmatprep.subr.mxu0 0.0
        %462 = vmatpush1.msra.mxu0 0.0
        %463 = vmatprep.subr.mxu0 0.0
        %464 = vmatpush1.msra.mxu0 0.0
        %465 = vmatprep.subr.mxu0 0.0
        %466 = vmatpush1.msra.mxu0 0.0
        %467 = vmatprep.subr.mxu0 0.0
        %468 = vmatpush1.msra.mxu0 0.0
        %469 = vmatprep.subr.mxu0 0.0
        %470 = vmatpush1.msra.mxu0 0.0
        %471 = vmatprep.subr.mxu0 0.0
        %472 = vmatpush1.msra.mxu0 0.0
        %473 = vmatprep.subr.mxu0 0.0
        %474 = vmatpush1.msra.mxu0 0.0
        %475 = vmatprep.subr.mxu0 0.0
        %476 = vmatpush1.msra.mxu0 0.0
        %477 = vmatprep.subr.mxu0 0.0
        %478 = vmatpush1.msra.mxu0 0.0
        %479 = vmatprep.subr.mxu0 0.0
        %480 = vmatpush1.msra.mxu0 0.0
        %481 = vmatprep.subr.mxu0 0.0
        %482 = vmatpush1.msra.mxu0 0.0
        %483 = vmatprep.subr.mxu0 0.0
        %484 = vmatpush1.msra.mxu0 0.0
        %485 = vmatprep.subr.mxu0 0.0
        %486 = vmatpush1.msra.mxu0 0.0
        %487 = vmatprep.subr.mxu0 0.0
        %488 = vmatpush1.msra.mxu0 0.0
        %489 = vmatprep.subr.mxu0 0.0
        %490 = vmatpush1.msra.mxu0 0.0
        %491 = vmatprep.subr.mxu0 0.0
        %492 = vmatpush1.msra.mxu0 0.0
        %493 = vmatprep.subr.mxu0 0.0
        %494 = vmatpush1.msra.mxu0 0.0
        %495 = vmatprep.subr.mxu0 0.0
        %496 = vmatpush1.msra.mxu0 0.0
        %497 = vmatprep.subr.mxu0 0.0
        %498 = vmatpush1.msra.mxu0 0.0
        %499 = vmatprep.subr.mxu0 0.0
        %500 = vmatpush1.msra.mxu0 0.0
        %501 = vmatprep.subr.mxu0 0.0
        %502 = vmatpush1.msra.mxu0 0.0
        %503 = vmatprep.subr.mxu0 0.0
        %504 = vmatpush1.msra.mxu0 0.0
        %505 = vmatprep.mubr.f32.mxu0 0.0
        %506 = vmatmul.mubr.f32.gmra.mrb[0].mxu0 %v424
        %v507 = vpop.f32.mrb[0].mxu0
        %v508 = vadd.f32 0.0, %v507
        %v509 = vpop.f32.mrb[0].mxu0
        %510 = vmatprep.mubr.f32.mxu0 0.0
        %511 = vmatmul.mubr.f32.gmra.mrb[0].mxu0 %v427
        %v512 = vpop.f32.mrb[0].mxu0
        %v513 = vadd.f32 0.0, %v512
        %v514 = vpop.f32.mrb[0].mxu0
        %515 = vmatprep.mubr.f32.mxu0 0.0
        %516 = vmatmul.mubr.f32.gmra.mrb[0].mxu0 %v430
        %v517 = vpop.f32.mrb[0].mxu0
        %v518 = vadd.f32 0.0, %v517
        %v519 = vpop.f32.mrb[0].mxu0
        %520 = vmatprep.mubr.f32.mxu0 0.0
        %521 = vmatmul.mubr.f32.gmra.mrb[0].mxu0 %v433
        %v522 = vpop.f32.mrb[0].mxu0
        %v523 = vadd.f32 0.0, %v522
        %v524 = vpop.f32.mrb[0].mxu0
        %525 = vmatprep.mubr.f32.mxu0 0.0
        %526 = vmatmul.mubr.f32.gmra.mrb[0].mxu0 %v436
        %v527 = vpop.f32.mrb[0].mxu0
        %v528 = vadd.f32 0.0, %v527
        %v529 = vpop.f32.mrb[0].mxu0
        %530 = vmatprep.mubr.f32.mxu0 0.0
        %531 = vmatmul.mubr.f32.gmra.mrb[0].mxu0 %v439
        %v532 = vpop.f32.mrb[0].mxu0
        %v533 = vadd.f32 0.0, %v532
        %v534 = vpop.f32.mrb[0].mxu0
        %535 = vdwg.mxu0
        %vm536 = vcmask 15360
        %v537 = vsel %vm536, %v508, 0.0
        %v538 = vsel %vm536, %v513, 0.0
        %v539 = vadd.f32 %v537, %v538
        %v540 = vrot.slane %v539, 4
        %v541 = vadd.f32 %v539, %v540
        %v542 = vrot.slane %v541, 2
        %v543 = vadd.f32 %v541, %v542
        %v544 = vrot.slane %v543, 1
        %v545 = vadd.f32 %v543, %v544
        %v546 = vsel %vm536, %v518, 0.0
        %v547 = vsel %vm536, %v523, 0.0
        %v548 = vadd.f32 %v546, %v547
        %v549 = vrot.slane %v548, 4
        %v550 = vadd.f32 %v548, %v549
        %v551 = vrot.slane %v550, 2
        %v552 = vadd.f32 %v550, %v551
        %v553 = vrot.slane %v552, 1
        %v554 = vadd.f32 %v552, %v553
        %v555 = vsel %vm536, %v528, 0.0
        %v556 = vsel %vm536, %v533, 0.0
        %v557 = vadd.f32 %v555, %v556
        %v558 = vrot.slane %v557, 4
        %v559 = vadd.f32 %v557, %v558
        %v560 = vrot.slane %v559, 2
        %v561 = vadd.f32 %v559, %v560
        %v562 = vrot.slane %v561, 1
        %v563 = vadd.f32 %v561, %v562
        %v564 = vmax.f32 %v545, 1e-24
        %v565 = vrsqrt.pop %v564
        %v566 = vmax.f32 %v554, 1e-24
        %v567 = vrsqrt.pop %v566
        %v568 = vmul.f32 %v545, %v565
        %v569 = vmul.f32 %v568, %v565
        %v570 = vmul.f32 %v554, %v567
        %v571 = vmul.f32 %v570, %v567
        %v572 = vadd.f32 %v569, %v571
        %v573 = vmul.f32 %v563, 2.0
        %v574 = vmul.f32 %v573, %v565
        %v575 = vmul.f32 %v574, %v567
        %v576 = vsub.f32 %v572, %v575
        %vm577 = vcmask 8192
        %578 = vst.msk [vmem:[%s297] sm:$0x1] %vm577, %v576
        %s579 = sand.u32 %s122, 1
        %s580 = scalar_lea.sflag [#allocation4], %s579
        %s581 = sand.u32 %s122, 1
        %s582 = scalar_lea.vmem [#allocation7], %s581
        // Predicated region
        $region41: #{tpu_custom_call.1} parent=31 // pred_check
          %p583 = pneg %p132
        $region42: #{tpu_custom_call.1} parent=31 // pred_check_branch
          %585 = sbr.rel (%p583) target = $region44
        $region43: #{tpu_custom_call.1} parent=31 // pred_region
          %s587 = ssub.s32 16, 16
          %588 = vsyncadd %s580, %s587
          %s589 = sadd.s32 %s28, %s27
          %s590 = smul.addr %s589, 16
          %s591 = scalar_lea.hbm %s3, %s590
          %s593 = sshll.u32 %s582, 4
          %s594 = int_to_ptr.vmem [resolvable:$true] %s593
          %596 = dma.vmem_to_hbm [thread:$0]  %s594, 16, %s591, %s580
        $region44: #{tpu_custom_call.1} parent=31 // pred_fallthru
          _
      $region32: #{tpu_custom_call.1} parent=5 // pred_fallthru
        _
      %p597 = scmp.le.s32.totalorder 2, %s18
      // Predicated region
      $region45: #{tpu_custom_call.1} parent=5 // pred_check
        %p598 = pneg %p597
      $region46: #{tpu_custom_call.1} parent=5 // pred_check_branch
        %600 = sbr.rel (%p598) target = $region48
      $region47: #{tpu_custom_call.1} parent=5 // pred_region
        %s601 = ssub.s32 %s18, 2
        // Predicated region
        $region49: #{tpu_custom_call.1} parent=47 // pred_check
          %p602 = pneg %p138
        $region50: #{tpu_custom_call.1} parent=47 // pred_check_branch
          %604 = sbr.rel (%p602) target = $region52
        $region51: #{tpu_custom_call.1} parent=47 // pred_region
          %s605 = sand.u32 %s123, 1
          %s606 = scalar_lea.sflag [#allocation4], %s605
          %s607 = sand.u32 %s123, 1
          %s608 = scalar_lea.vmem [#allocation7], %s607
          %609 = dma.done %s606, 16
        $region52: #{tpu_custom_call.1} parent=47 // pred_fallthru
          _
      $region48: #{tpu_custom_call.1} parent=5 // pred_fallthru
        _
    $region6: #{tpu_custom_call.1} parent=1 // loop_footer
      %s22 = sadd.s32 1, %s18
    $region7: #{tpu_custom_call.1} parent=1 // loop_footer_branch
      %17 = sbr.rel target = $region3
    $region8: #{tpu_custom_call.1} parent=1 // loop_exit
      _
    %610 = vsyncpa [#allocation3], 1
    %s611 = scalar_lea.sflag [#allocation3], 1
    %612 = vsyncpa %s611, 1
    %613 = vsyncpa [#allocation6], 1
    %s614 = scalar_lea.sflag [#allocation6], 1
    %615 = vsyncpa %s614, 1
    %616 = vsyncpa [#allocation4], 1
    %s617 = scalar_lea.sflag [#allocation4], 1
    %618 = vsyncpa %s617, 1

</llo_original>
